<compile_context>
chip_gen: v7x
topology: tpu7x:2x2x1
jax: 0.10.0
libtpu: 0.0.40
codegen_flags: <defaults>
</compile_context>

<pallas_src>
import functools

import jax
import jax.numpy as jnp
from jax import lax
from jax.experimental import pallas as pl
from jax.experimental.pallas import tpu as pltpu


def _conv2d_kernel(x_ref, w_ref, o_ref, patch_ref, *,
                   kh, kw, cin, w_in, mw, n):
    # x_ref:     (N, Cin, L)     width-padded, row-major-flattened spatial input
    # w_ref:     (Cout, KK)      KK = KH*KW*8 + 1 (Cin padded to 8 sublanes, +1 bias col)
    # o_ref:     (N, Cout, MW)   MW = H*W ("wide" rows; wrapper crops to HO x WO)
    # patch_ref: (KK, N*MW)      VMEM scratch: im2col patch matrix
    kk8 = kh * kw * 8

    # One full, unmasked store initializes the scratch: zeros everywhere except
    # the final "ones" row (folds the bias into the matmul).  This also zeroes
    # the Cin->8 sublane-padding rows (scratch memory is uninitialized).
    row_ids = lax.broadcasted_iota(jnp.int32, patch_ref.shape, 0)
    patch_ref[...] = (row_ids == kk8).astype(patch_ref.dtype)

    # im2col: each tap writes Cin rows starting at a sublane-aligned row (t*8);
    # each image occupies a 128-lane-aligned block of width MW.
    # patch[t*8 + c, i*MW + ho*W + w] = x[i, c, ho + t_kh, w + t_kw]   (valid part)
    for i in range(n):
        for t_kh in range(kh):
            for t_kw in range(kw):
                t = t_kh * kw + t_kw
                start = t_kh * w_in + t_kw
                patch_ref[t * 8:t * 8 + cin, i * mw:(i + 1) * mw] = (
                    x_ref[i, :, start:start + mw])

    # Single MXU matmul for the whole batch: (Cout, KK) x (KK, N*MW) -> (Cout, N*MW),
    # f32 accumulation.  Bias comes in through the appended ones-row/bias-column.
    acc = lax.dot_general(
        w_ref[...], patch_ref[...],
        dimension_numbers=(((1,), (0,)), ((), ())),
        preferred_element_type=jnp.float32,
    )

    # Lane-dense, fully aligned output stores (MW and i*MW are multiples of 128).
    for i in range(n):
        o_ref[i] = acc[:, i * mw:(i + 1) * mw].astype(o_ref.dtype)


def conv2d_pallas(x_nchw, weight_oihw, bias, *, compute_dtype=None):
    """Conv2d (stride=1, padding=0) matching PyTorch nn.Conv2d.

    x_nchw:      (N, Cin, H, W)
    weight_oihw: (Cout, Cin, KH, KW)
    bias:        (Cout,)
    compute_dtype: operand dtype for the MXU (default: x dtype). jnp.bfloat16
                   gives ~3x MXU rate on larger problems at reduced precision
                   (bias is cast along with the weights in that mode).
    returns:     (N, Cout, HO, WO)
    """
    n, cin, h, w_in = x_nchw.shape
    cout, _, kh, kw = weight_oihw.shape
    ho, wo = h - kh + 1, w_in - kw + 1
    assert cin <= 8, "this kernel packs Cin into a single 8-sublane block"

    if compute_dtype is None:
        compute_dtype = x_nchw.dtype

    mw = h * w_in                            # wide output length per image (lane aligned)
    pad_tail = (kh - 1) * w_in + (kw - 1)    # so every tap's flat window is in-bounds
    l = mw + pad_tail
    kk = kh * kw * 8 + 1                     # Cin padded to 8 sublanes, +1 bias row

    # Glue (no transposes of the big tensor): flatten spatial row-major and pad the
    # tail.  Weight is tiny: relayout to (Cout, KH*KW, 8) with zero-padded channels,
    # flatten, and append the bias column (matches the ones-row in the patch).
    x_flat = jnp.pad(
        x_nchw.reshape(n, cin, h * w_in),
        ((0, 0), (0, 0), (0, pad_tail))).astype(compute_dtype)
    w_t = jnp.transpose(weight_oihw, (0, 2, 3, 1)).reshape(cout, kh * kw, cin)
    w_pad = jnp.pad(w_t, ((0, 0), (0, 0), (0, 8 - cin)))
    w2d = jnp.concatenate(
        [w_pad.reshape(cout, kh * kw * 8), bias.reshape(cout, 1)],
        axis=1).astype(compute_dtype)

    kernel = functools.partial(
        _conv2d_kernel, kh=kh, kw=kw, cin=cin, w_in=w_in, mw=mw, n=n)

    in_itemsize = jnp.dtype(compute_dtype).itemsize
    out_itemsize = jnp.dtype(x_nchw.dtype).itemsize
    cost = pl.CostEstimate(
        flops=2 * n * ho * wo * (kh * kw * cin) * cout,
        transcendentals=0,
        bytes_accessed=(x_flat.size + w2d.size) * in_itemsize
                       + n * cout * mw * out_itemsize,
    )

    # Single kernel step: whole operands live in VMEM (total footprint < 200 KiB),
    # defaults place full-array blocks in VMEM.
    out_wide = pl.pallas_call(
        kernel,
        out_shape=jax.ShapeDtypeStruct((n, cout, mw), x_nchw.dtype),
        scratch_shapes=[pltpu.VMEM((kk, n * mw), compute_dtype)],
        cost_estimate=cost,
    )(x_flat, w2d)

    # Free reshape + cheap crop of the wrapped rows/columns -> NCHW.
    return out_wide.reshape(n, cout, h, w_in)[:, :, :ho, :wo]


if __name__ == "__main__":
    # Shapes consistent with the module: nn.Conv2d(4, 8, 3) on (2, 4, 16, 16)
    N, CIN, H, W = 2, 4, 16, 16
    COUT, K = 8, 3

    key = jax.random.PRNGKey(0)
    kx, kw_, kb = jax.random.split(key, 3)

    x = jax.random.normal(kx, (N, CIN, H, W), dtype=jnp.float32)

    # PyTorch-style init: U(-bound, bound), bound = 1/sqrt(fan_in)
    fan_in = CIN * K * K
    bound = 1.0 / jnp.sqrt(jnp.float32(fan_in))
    weight = jax.random.uniform(kw_, (COUT, CIN, K, K), jnp.float32, -bound, bound)
    bias = jax.random.uniform(kb, (COUT,), jnp.float32, -bound, bound)

    conv2d = jax.jit(conv2d_pallas)
    out = conv2d(x, weight, bias)
    out = jax.block_until_ready(out)

    # Reference: XLA conv with the same semantics as nn.Conv2d.
    ref = lax.conv_general_dilated(
        x, weight, window_strides=(1, 1), padding="VALID",
        dimension_numbers=("NCHW", "OIHW", "NCHW"),
    ) + bias.reshape(1, COUT, 1, 1)

    assert out.shape == (N, COUT, H - K + 1, W - K + 1)
    max_err = float(jnp.max(jnp.abs(out - ref)))
    assert jnp.allclose(out, ref, atol=1e-3, rtol=1e-3), max_err

    print("KERNEL_OK")
</pallas_src>

<mosaic_0001>
module attributes {stable_mosaic.version = 11 : i64} {
  func.func @_conv2d_kernel(%arg0: memref<2x4x290xf32, #tpu.memory_space<vmem>>, %arg1: memref<8x73xf32, #tpu.memory_space<vmem>>, %arg2: memref<2x8x256xf32, #tpu.memory_space<vmem>>, %arg3: memref<73x512xf32, #tpu.memory_space<vmem>>) attributes {dimension_semantics = [], scalar_prefetch = 0 : i64, scratch_operands = 1 : i64, tpu.core_type = #tpu.core_type<tc>} {
    %0 = tpu.iota {dimensions = array<i32: 0>} : vector<73x512xi32>
    %c72_i32 = arith.constant 72 : i32
    %1 = vector.broadcast %c72_i32 : i32 to vector<73x512xi32>
    %2 = arith.cmpi eq, %0, %1 : vector<73x512xi32>
    %3 = arith.extui %2 : vector<73x512xi1> to vector<73x512xi32>
    %4 = arith.sitofp %3 : vector<73x512xi32> to vector<73x512xf32>
    %c0 = arith.constant 0 : index
    %c0_0 = arith.constant 0 : index
    %5 = vector.load %arg3[%c0, %c0_0] : memref<73x512xf32, #tpu.memory_space<vmem>>, vector<73x512xf32>
    tpu.vector_store %arg3[%c0, %c0_0], %4 {strides = array<i32>} : memref<73x512xf32, #tpu.memory_space<vmem>>, vector<73x512xf32>,
    %c0_1 = arith.constant 0 : index
    %c0_2 = arith.constant 0 : index
    %c0_3 = arith.constant 0 : index
    %6 = vector.load %arg0[%c0_1, %c0_2, %c0_3] : memref<2x4x290xf32, #tpu.memory_space<vmem>>, vector<1x4x256xf32>
    %7 = vector.shape_cast %6 : vector<1x4x256xf32> to vector<4x256xf32>
    %c0_4 = arith.constant 0 : index
    %c0_5 = arith.constant 0 : index
    %8 = vector.load %arg3[%c0_4, %c0_5] : memref<73x512xf32, #tpu.memory_space<vmem>>, vector<4x256xf32>
    tpu.vector_store %arg3[%c0_4, %c0_5], %7 {strides = array<i32>} : memref<73x512xf32, #tpu.memory_space<vmem>>, vector<4x256xf32>,
    %c0_6 = arith.constant 0 : index
    %c0_7 = arith.constant 0 : index
    %c1 = arith.constant 1 : index
    %9 = vector.load %arg0[%c0_6, %c0_7, %c1] : memref<2x4x290xf32, #tpu.memory_space<vmem>>, vector<1x4x256xf32>
    %10 = vector.shape_cast %9 : vector<1x4x256xf32> to vector<4x256xf32>
    %c8 = arith.constant 8 : index
    %c0_8 = arith.constant 0 : index
    %11 = vector.load %arg3[%c8, %c0_8] : memref<73x512xf32, #tpu.memory_space<vmem>>, vector<4x256xf32>
    tpu.vector_store %arg3[%c8, %c0_8], %10 {strides = array<i32>} : memref<73x512xf32, #tpu.memory_space<vmem>>, vector<4x256xf32>,
    %c0_9 = arith.constant 0 : index
    %c0_10 = arith.constant 0 : index
    %c2 = arith.constant 2 : index
    %12 = vector.load %arg0[%c0_9, %c0_10, %c2] : memref<2x4x290xf32, #tpu.memory_space<vmem>>, vector<1x4x256xf32>
    %13 = vector.shape_cast %12 : vector<1x4x256xf32> to vector<4x256xf32>
    %c16 = arith.constant 16 : index
    %c0_11 = arith.constant 0 : index
    %14 = vector.load %arg3[%c16, %c0_11] : memref<73x512xf32, #tpu.memory_space<vmem>>, vector<4x256xf32>
    tpu.vector_store %arg3[%c16, %c0_11], %13 {strides = array<i32>} : memref<73x512xf32, #tpu.memory_space<vmem>>, vector<4x256xf32>,
    %c0_12 = arith.constant 0 : index
    %c0_13 = arith.constant 0 : index
    %c16_14 = arith.constant 16 : index
    %15 = vector.load %arg0[%c0_12, %c0_13, %c16_14] : memref<2x4x290xf32, #tpu.memory_space<vmem>>, vector<1x4x256xf32>
    %16 = vector.shape_cast %15 : vector<1x4x256xf32> to vector<4x256xf32>
    %c24 = arith.constant 24 : index
    %c0_15 = arith.constant 0 : index
    %17 = vector.load %arg3[%c24, %c0_15] : memref<73x512xf32, #tpu.memory_space<vmem>>, vector<4x256xf32>
    tpu.vector_store %arg3[%c24, %c0_15], %16 {strides = array<i32>} : memref<73x512xf32, #tpu.memory_space<vmem>>, vector<4x256xf32>,
    %c0_16 = arith.constant 0 : index
    %c0_17 = arith.constant 0 : index
    %c17 = arith.constant 17 : index
    %18 = vector.load %arg0[%c0_16, %c0_17, %c17] : memref<2x4x290xf32, #tpu.memory_space<vmem>>, vector<1x4x256xf32>
    %19 = vector.shape_cast %18 : vector<1x4x256xf32> to vector<4x256xf32>
    %c32 = arith.constant 32 : index
    %c0_18 = arith.constant 0 : index
    %20 = vector.load %arg3[%c32, %c0_18] : memref<73x512xf32, #tpu.memory_space<vmem>>, vector<4x256xf32>
    tpu.vector_store %arg3[%c32, %c0_18], %19 {strides = array<i32>} : memref<73x512xf32, #tpu.memory_space<vmem>>, vector<4x256xf32>,
    %c0_19 = arith.constant 0 : index
    %c0_20 = arith.constant 0 : index
    %c18 = arith.constant 18 : index
    %21 = vector.load %arg0[%c0_19, %c0_20, %c18] : memref<2x4x290xf32, #tpu.memory_space<vmem>>, vector<1x4x256xf32>
    %22 = vector.shape_cast %21 : vector<1x4x256xf32> to vector<4x256xf32>
    %c40 = arith.constant 40 : index
    %c0_21 = arith.constant 0 : index
    %23 = vector.load %arg3[%c40, %c0_21] : memref<73x512xf32, #tpu.memory_space<vmem>>, vector<4x256xf32>
    tpu.vector_store %arg3[%c40, %c0_21], %22 {strides = array<i32>} : memref<73x512xf32, #tpu.memory_space<vmem>>, vector<4x256xf32>,
    %c0_22 = arith.constant 0 : index
    %c0_23 = arith.constant 0 : index
    %c32_24 = arith.constant 32 : index
    %24 = vector.load %arg0[%c0_22, %c0_23, %c32_24] : memref<2x4x290xf32, #tpu.memory_space<vmem>>, vector<1x4x256xf32>
    %25 = vector.shape_cast %24 : vector<1x4x256xf32> to vector<4x256xf32>
    %c48 = arith.constant 48 : index
    %c0_25 = arith.constant 0 : index
    %26 = vector.load %arg3[%c48, %c0_25] : memref<73x512xf32, #tpu.memory_space<vmem>>, vector<4x256xf32>
    tpu.vector_store %arg3[%c48, %c0_25], %25 {strides = array<i32>} : memref<73x512xf32, #tpu.memory_space<vmem>>, vector<4x256xf32>,
    %c0_26 = arith.constant 0 : index
    %c0_27 = arith.constant 0 : index
    %c33 = arith.constant 33 : index
    %27 = vector.load %arg0[%c0_26, %c0_27, %c33] : memref<2x4x290xf32, #tpu.memory_space<vmem>>, vector<1x4x256xf32>
    %28 = vector.shape_cast %27 : vector<1x4x256xf32> to vector<4x256xf32>
    %c56 = arith.constant 56 : index
    %c0_28 = arith.constant 0 : index
    %29 = vector.load %arg3[%c56, %c0_28] : memref<73x512xf32, #tpu.memory_space<vmem>>, vector<4x256xf32>
    tpu.vector_store %arg3[%c56, %c0_28], %28 {strides = array<i32>} : memref<73x512xf32, #tpu.memory_space<vmem>>, vector<4x256xf32>,
    %c0_29 = arith.constant 0 : index
    %c0_30 = arith.constant 0 : index
    %c34 = arith.constant 34 : index
    %30 = vector.load %arg0[%c0_29, %c0_30, %c34] : memref<2x4x290xf32, #tpu.memory_space<vmem>>, vector<1x4x256xf32>
    %31 = vector.shape_cast %30 : vector<1x4x256xf32> to vector<4x256xf32>
    %c64 = arith.constant 64 : index
    %c0_31 = arith.constant 0 : index
    %32 = vector.load %arg3[%c64, %c0_31] : memref<73x512xf32, #tpu.memory_space<vmem>>, vector<4x256xf32>
    tpu.vector_store %arg3[%c64, %c0_31], %31 {strides = array<i32>} : memref<73x512xf32, #tpu.memory_space<vmem>>, vector<4x256xf32>,
    %c1_32 = arith.constant 1 : index
    %c0_33 = arith.constant 0 : index
    %c0_34 = arith.constant 0 : index
    %33 = vector.load %arg0[%c1_32, %c0_33, %c0_34] : memref<2x4x290xf32, #tpu.memory_space<vmem>>, vector<1x4x256xf32>
    %34 = vector.shape_cast %33 : vector<1x4x256xf32> to vector<4x256xf32>
    %c0_35 = arith.constant 0 : index
    %c256 = arith.constant 256 : index
    %35 = vector.load %arg3[%c0_35, %c256] : memref<73x512xf32, #tpu.memory_space<vmem>>, vector<4x256xf32>
    tpu.vector_store %arg3[%c0_35, %c256], %34 {strides = array<i32>} : memref<73x512xf32, #tpu.memory_space<vmem>>, vector<4x256xf32>,
    %c1_36 = arith.constant 1 : index
    %c0_37 = arith.constant 0 : index
    %c1_38 = arith.constant 1 : index
    %36 = vector.load %arg0[%c1_36, %c0_37, %c1_38] : memref<2x4x290xf32, #tpu.memory_space<vmem>>, vector<1x4x256xf32>
    %37 = vector.shape_cast %36 : vector<1x4x256xf32> to vector<4x256xf32>
    %c8_39 = arith.constant 8 : index
    %c256_40 = arith.constant 256 : index
    %38 = vector.load %arg3[%c8_39, %c256_40] : memref<73x512xf32, #tpu.memory_space<vmem>>, vector<4x256xf32>
    tpu.vector_store %arg3[%c8_39, %c256_40], %37 {strides = array<i32>} : memref<73x512xf32, #tpu.memory_space<vmem>>, vector<4x256xf32>,
    %c1_41 = arith.constant 1 : index
    %c0_42 = arith.constant 0 : index
    %c2_43 = arith.constant 2 : index
    %39 = vector.load %arg0[%c1_41, %c0_42, %c2_43] : memref<2x4x290xf32, #tpu.memory_space<vmem>>, vector<1x4x256xf32>
    %40 = vector.shape_cast %39 : vector<1x4x256xf32> to vector<4x256xf32>
    %c16_44 = arith.constant 16 : index
    %c256_45 = arith.constant 256 : index
    %41 = vector.load %arg3[%c16_44, %c256_45] : memref<73x512xf32, #tpu.memory_space<vmem>>, vector<4x256xf32>
    tpu.vector_store %arg3[%c16_44, %c256_45], %40 {strides = array<i32>} : memref<73x512xf32, #tpu.memory_space<vmem>>, vector<4x256xf32>,
    %c1_46 = arith.constant 1 : index
    %c0_47 = arith.constant 0 : index
    %c16_48 = arith.constant 16 : index
    %42 = vector.load %arg0[%c1_46, %c0_47, %c16_48] : memref<2x4x290xf32, #tpu.memory_space<vmem>>, vector<1x4x256xf32>
    %43 = vector.shape_cast %42 : vector<1x4x256xf32> to vector<4x256xf32>
    %c24_49 = arith.constant 24 : index
    %c256_50 = arith.constant 256 : index
    %44 = vector.load %arg3[%c24_49, %c256_50] : memref<73x512xf32, #tpu.memory_space<vmem>>, vector<4x256xf32>
    tpu.vector_store %arg3[%c24_49, %c256_50], %43 {strides = array<i32>} : memref<73x512xf32, #tpu.memory_space<vmem>>, vector<4x256xf32>,
    %c1_51 = arith.constant 1 : index
    %c0_52 = arith.constant 0 : index
    %c17_53 = arith.constant 17 : index
    %45 = vector.load %arg0[%c1_51, %c0_52, %c17_53] : memref<2x4x290xf32, #tpu.memory_space<vmem>>, vector<1x4x256xf32>
    %46 = vector.shape_cast %45 : vector<1x4x256xf32> to vector<4x256xf32>
    %c32_54 = arith.constant 32 : index
    %c256_55 = arith.constant 256 : index
    %47 = vector.load %arg3[%c32_54, %c256_55] : memref<73x512xf32, #tpu.memory_space<vmem>>, vector<4x256xf32>
    tpu.vector_store %arg3[%c32_54, %c256_55], %46 {strides = array<i32>} : memref<73x512xf32, #tpu.memory_space<vmem>>, vector<4x256xf32>,
    %c1_56 = arith.constant 1 : index
    %c0_57 = arith.constant 0 : index
    %c18_58 = arith.constant 18 : index
    %48 = vector.load %arg0[%c1_56, %c0_57, %c18_58] : memref<2x4x290xf32, #tpu.memory_space<vmem>>, vector<1x4x256xf32>
    %49 = vector.shape_cast %48 : vector<1x4x256xf32> to vector<4x256xf32>
    %c40_59 = arith.constant 40 : index
    %c256_60 = arith.constant 256 : index
    %50 = vector.load %arg3[%c40_59, %c256_60] : memref<73x512xf32, #tpu.memory_space<vmem>>, vector<4x256xf32>
    tpu.vector_store %arg3[%c40_59, %c256_60], %49 {strides = array<i32>} : memref<73x512xf32, #tpu.memory_space<vmem>>, vector<4x256xf32>,
    %c1_61 = arith.constant 1 : index
    %c0_62 = arith.constant 0 : index
    %c32_63 = arith.constant 32 : index
    %51 = vector.load %arg0[%c1_61, %c0_62, %c32_63] : memref<2x4x290xf32, #tpu.memory_space<vmem>>, vector<1x4x256xf32>
    %52 = vector.shape_cast %51 : vector<1x4x256xf32> to vector<4x256xf32>
    %c48_64 = arith.constant 48 : index
    %c256_65 = arith.constant 256 : index
    %53 = vector.load %arg3[%c48_64, %c256_65] : memref<73x512xf32, #tpu.memory_space<vmem>>, vector<4x256xf32>
    tpu.vector_store %arg3[%c48_64, %c256_65], %52 {strides = array<i32>} : memref<73x512xf32, #tpu.memory_space<vmem>>, vector<4x256xf32>,
    %c1_66 = arith.constant 1 : index
    %c0_67 = arith.constant 0 : index
    %c33_68 = arith.constant 33 : index
    %54 = vector.load %arg0[%c1_66, %c0_67, %c33_68] : memref<2x4x290xf32, #tpu.memory_space<vmem>>, vector<1x4x256xf32>
    %55 = vector.shape_cast %54 : vector<1x4x256xf32> to vector<4x256xf32>
    %c56_69 = arith.constant 56 : index
    %c256_70 = arith.constant 256 : index
    %56 = vector.load %arg3[%c56_69, %c256_70] : memref<73x512xf32, #tpu.memory_space<vmem>>, vector<4x256xf32>
    tpu.vector_store %arg3[%c56_69, %c256_70], %55 {strides = array<i32>} : memref<73x512xf32, #tpu.memory_space<vmem>>, vector<4x256xf32>,
    %c1_71 = arith.constant 1 : index
    %c0_72 = arith.constant 0 : index
    %c34_73 = arith.constant 34 : index
    %57 = vector.load %arg0[%c1_71, %c0_72, %c34_73] : memref<2x4x290xf32, #tpu.memory_space<vmem>>, vector<1x4x256xf32>
    %58 = vector.shape_cast %57 : vector<1x4x256xf32> to vector<4x256xf32>
    %c64_74 = arith.constant 64 : index
    %c256_75 = arith.constant 256 : index
    %59 = vector.load %arg3[%c64_74, %c256_75] : memref<73x512xf32, #tpu.memory_space<vmem>>, vector<4x256xf32>
    tpu.vector_store %arg3[%c64_74, %c256_75], %58 {strides = array<i32>} : memref<73x512xf32, #tpu.memory_space<vmem>>, vector<4x256xf32>,
    %c0_76 = arith.constant 0 : index
    %c0_77 = arith.constant 0 : index
    %60 = vector.load %arg1[%c0_76, %c0_77] : memref<8x73xf32, #tpu.memory_space<vmem>>, vector<8x73xf32>
    %c0_78 = arith.constant 0 : index
    %c0_79 = arith.constant 0 : index
    %61 = vector.load %arg3[%c0_78, %c0_79] : memref<73x512xf32, #tpu.memory_space<vmem>>, vector<73x512xf32>
    %cst = arith.constant dense<0.000000e+00> : vector<8x512xf32>
    %62 = tpu.matmul %60, %61, %cst {dimension_numbers = #tpu.dot_dimension_numbers<[1], [0], [0], [1], [0, 0, 1, 1], [], []>} : vector<8x73xf32>, vector<73x512xf32>, vector<8x512xf32> -> vector<8x512xf32>
    %63 = vector.extract_strided_slice %62 {offsets = [0, 0], sizes = [8, 256], strides = [1, 1]} : vector<8x512xf32> to vector<8x256xf32>
    %c0_80 = arith.constant 0 : index
    %c0_81 = arith.constant 0 : index
    %c0_82 = arith.constant 0 : index
    %64 = vector.load %arg2[%c0_80, %c0_81, %c0_82] : memref<2x8x256xf32, #tpu.memory_space<vmem>>, vector<1x8x256xf32>
    %65 = vector.shape_cast %64 : vector<1x8x256xf32> to vector<8x256xf32>
    %66 = vector.shape_cast %63 : vector<8x256xf32> to vector<1x8x256xf32>
    tpu.vector_store %arg2[%c0_80, %c0_81, %c0_82], %66 {strides = array<i32>} : memref<2x8x256xf32, #tpu.memory_space<vmem>>, vector<1x8x256xf32>,
    %67 = vector.extract_strided_slice %62 {offsets = [0, 256], sizes = [8, 256], strides = [1, 1]} : vector<8x512xf32> to vector<8x256xf32>
    %c1_83 = arith.constant 1 : index
    %c0_84 = arith.constant 0 : index
    %c0_85 = arith.constant 0 : index
    %68 = vector.load %arg2[%c1_83, %c0_84, %c0_85] : memref<2x8x256xf32, #tpu.memory_space<vmem>>, vector<1x8x256xf32>
    %69 = vector.shape_cast %68 : vector<1x8x256xf32> to vector<8x256xf32>
    %70 = vector.shape_cast %67 : vector<8x256xf32> to vector<1x8x256xf32>
    tpu.vector_store %arg2[%c1_83, %c0_84, %c0_85], %70 {strides = array<i32>} : memref<2x8x256xf32, #tpu.memory_space<vmem>>, vector<1x8x256xf32>,
    return
  }
}

</mosaic_0001>

<llo_original>
// kernel: conv2d_pallas.1
$region0: #{conv2d_pallas.1}
  #allocation0 [shape = 'u32[]', space=smem, size = 0x4, offset = 0x4, fixed_abs, tag = 'smem constant byte address 0x4 - core index']
  #allocation1 [shape = 'u32[144,128]{1,0:T(1,128)}', space=vmem, size = 0x12000, scoped, tag = 'internal scratch']
  #allocation2 [shape = 'f32[73,512]{1,0:T(8,128)}', space=vmem, size = 0x28000, scoped, tag = 'scratch operand']
  %s0 = inlined_call_operand.vmem [shape: f32[2,4,290], index: 0, kind: input, shape index: {}]
  %s1 = inlined_call_operand.vmem [shape: f32[8,73], index: 1, kind: input, shape index: {}]
  %s2 = inlined_call_operand.vmem [shape: f32[2,8,256], index: 2, kind: output, shape index: {}]
  %s3 = sld [smem:[#allocation0]]
  $region18: #{conv2d_pallas.1} parent=0
    _
  %s5 = ssub.s32 1, %s3
  %s6 = scalar_select 0, %s5, %s3
  // Predicated region
  $region2: #{conv2d_pallas.1} parent=0 // pred_check
    _
  $region3: #{conv2d_pallas.1} parent=0 // pred_check_branch
    %8 = sbr.rel (0) target = $region5
  $region4: #{conv2d_pallas.1} parent=0 // pred_region
    _
  $region5: #{conv2d_pallas.1} parent=0 // pred_fallthru
    _
  // Predicated region
  $region6: #{conv2d_pallas.1} parent=0 // pred_check
    _
  $region7: #{conv2d_pallas.1} parent=0 // pred_check_branch
    %10 = sbr.rel (0) target = $region9
  $region8: #{conv2d_pallas.1} parent=0 // pred_region
    _
  $region9: #{conv2d_pallas.1} parent=0 // pred_fallthru
    _
  %v11 = vlaneseq
  %v12 = vshrl.u32 %v11, 7
  %v13 = vadd.s32 %v12, 8
  %v14 = vadd.s32 %v12, 16
  %v15 = vadd.s32 %v12, 24
  %v16 = vadd.s32 %v12, 32
  %v17 = vadd.s32 %v12, 40
  %v18 = vadd.s32 %v12, 48
  %v19 = vadd.s32 %v12, 56
  %v20 = vadd.s32 %v12, 64
  %v21 = vadd.s32 %v12, 72
  %vm22 = vcmp.eq.s32.totalorder %v12, 72
  %vm23 = vcmp.eq.s32.totalorder %v13, 72
  %vm24 = vcmp.eq.s32.totalorder %v14, 72
  %vm25 = vcmp.eq.s32.totalorder %v15, 72
  %vm26 = vcmp.eq.s32.totalorder %v16, 72
  %vm27 = vcmp.eq.s32.totalorder %v17, 72
  %vm28 = vcmp.eq.s32.totalorder %v18, 72
  %vm29 = vcmp.eq.s32.totalorder %v19, 72
  %vm30 = vcmp.eq.s32.totalorder %v20, 72
  %vm31 = vcmp.eq.s32.totalorder %v21, 72
  %v32 = vsel %vm22, 1, 0
  %v33 = vsel %vm23, 1, 0
  %v34 = vsel %vm24, 1, 0
  %v35 = vsel %vm25, 1, 0
  %v36 = vsel %vm26, 1, 0
  %v37 = vsel %vm27, 1, 0
  %v38 = vsel %vm28, 1, 0
  %v39 = vsel %vm29, 1, 0
  %v40 = vsel %vm30, 1, 0
  %v41 = vsel %vm31, 1, 0
  %v42 = vcvt.s32.f32 %v32
  %v43 = vcvt.s32.f32 %v33
  %v44 = vcvt.s32.f32 %v34
  %v45 = vcvt.s32.f32 %v35
  %v46 = vcvt.s32.f32 %v36
  %v47 = vcvt.s32.f32 %v37
  %v48 = vcvt.s32.f32 %v38
  %v49 = vcvt.s32.f32 %v39
  %v50 = vcvt.s32.f32 %v40
  %v51 = vcvt.s32.f32 %v41
  %52 = vst [vmem:[#allocation2] sm:$0xff] %v42
  %53 = vst [vmem:[#allocation2 + $0x8] sm:$0xff] %v42
  %54 = vst [vmem:[#allocation2 + $0x10] sm:$0xff] %v42
  %55 = vst [vmem:[#allocation2 + $0x18] sm:$0xff] %v42
  %56 = vst [vmem:[#allocation2 + $0x20] sm:$0xff] %v43
  %57 = vst [vmem:[#allocation2 + $0x28] sm:$0xff] %v43
  %58 = vst [vmem:[#allocation2 + $0x30] sm:$0xff] %v43
  %59 = vst [vmem:[#allocation2 + $0x38] sm:$0xff] %v43
  %60 = vst [vmem:[#allocation2 + $0x40] sm:$0xff] %v44
  %61 = vst [vmem:[#allocation2 + $0x48] sm:$0xff] %v44
  %62 = vst [vmem:[#allocation2 + $0x50] sm:$0xff] %v44
  %63 = vst [vmem:[#allocation2 + $0x58] sm:$0xff] %v44
  %64 = vst [vmem:[#allocation2 + $0x60] sm:$0xff] %v45
  %65 = vst [vmem:[#allocation2 + $0x68] sm:$0xff] %v45
  %66 = vst [vmem:[#allocation2 + $0x70] sm:$0xff] %v45
  %67 = vst [vmem:[#allocation2 + $0x78] sm:$0xff] %v45
  %68 = vst [vmem:[#allocation2 + $0x80] sm:$0xff] %v46
  %69 = vst [vmem:[#allocation2 + $0x88] sm:$0xff] %v46
  %70 = vst [vmem:[#allocation2 + $0x90] sm:$0xff] %v46
  %71 = vst [vmem:[#allocation2 + $0x98] sm:$0xff] %v46
  %72 = vst [vmem:[#allocation2 + $0xa0] sm:$0xff] %v47
  %73 = vst [vmem:[#allocation2 + $0xa8] sm:$0xff] %v47
  %74 = vst [vmem:[#allocation2 + $0xb0] sm:$0xff] %v47
  %75 = vst [vmem:[#allocation2 + $0xb8] sm:$0xff] %v47
  %76 = vst [vmem:[#allocation2 + $0xc0] sm:$0xff] %v48
  %77 = vst [vmem:[#allocation2 + $0xc8] sm:$0xff] %v48
  %78 = vst [vmem:[#allocation2 + $0xd0] sm:$0xff] %v48
  %79 = vst [vmem:[#allocation2 + $0xd8] sm:$0xff] %v48
  %80 = vst [vmem:[#allocation2 + $0xe0] sm:$0xff] %v49
  %81 = vst [vmem:[#allocation2 + $0xe8] sm:$0xff] %v49
  %82 = vst [vmem:[#allocation2 + $0xf0] sm:$0xff] %v49
  %83 = vst [vmem:[#allocation2 + $0xf8] sm:$0xff] %v49
  %84 = vst [vmem:[#allocation2 + $0x100] sm:$0xff] %v50
  %85 = vst [vmem:[#allocation2 + $0x108] sm:$0xff] %v50
  %86 = vst [vmem:[#allocation2 + $0x110] sm:$0xff] %v50
  %87 = vst [vmem:[#allocation2 + $0x118] sm:$0xff] %v50
  %88 = vst [vmem:[#allocation2 + $0x120] sm:$0x1] %v51
  %89 = vst [vmem:[#allocation2 + $0x128] sm:$0x1] %v51
  %90 = vst [vmem:[#allocation2 + $0x130] sm:$0x1] %v51
  %91 = vst [vmem:[#allocation2 + $0x138] sm:$0x1] %v51
  %v92 = vld [vmem:[%s0] sm:$0xff]
  %v94 = vcombine.high %v92, %v92
  %96 = vst [vmem:[#allocation2] sm:$0xf] %v92
  %97 = vst [vmem:[#allocation2 + $0x8] sm:$0xf] %v94
  %v98 = vld [vmem:[%s0] sm:$0xff]
  %v99 = vld [vmem:[%s0 + $0x8] sm:$0xf]
  %v102 = vcombine.high %v98, %v98
  %103 = vrot.lane.b32.xlu0 %v98, 127
  %v104 = vpop.permute.xlu0 %103
  %105 = vrot.lane.b32.xlu0 %v102, 127
  %v106 = vpop.permute.xlu0 %105
  %107 = vrot.lane.b32.xlu0 %v99, 127
  %v108 = vpop.permute.xlu0 %107
  %vm109 = vcmask 1039360
  %v110 = vsel %vm109, %v104, %v106
  %v111 = vsel %vm109, %v106, %v108
  %114 = vst [vmem:[#allocation2 + $0x20] sm:$0xf] %v110
  %115 = vst [vmem:[#allocation2 + $0x28] sm:$0xf] %v111
  %v116 = vld [vmem:[%s0] sm:$0xff]
  %v117 = vld [vmem:[%s0 + $0x8] sm:$0xf]
  %v120 = vcombine.high %v116, %v116
  %121 = vrot.lane.b32.xlu0 %v116, 126
  %v122 = vpop.permute.xlu0 %121
  %123 = vrot.lane.b32.xlu0 %v120, 126
  %v124 = vpop.permute.xlu0 %123
  %125 = vrot.lane.b32.xlu0 %v117, 126
  %v126 = vpop.permute.xlu0 %125
  %vm127 = vcmask 1031168
  %v128 = vsel %vm127, %v122, %v124
  %v129 = vsel %vm127, %v124, %v126
  %132 = vst [vmem:[#allocation2 + $0x40] sm:$0xf] %v128
  %133 = vst [vmem:[#allocation2 + $0x48] sm:$0xf] %v129
  %v134 = vld [vmem:[%s0] sm:$0xff]
  %v135 = vld [vmem:[%s0 + $0x8] sm:$0xf]
  %v138 = vcombine.high %v134, %v134
  %139 = vrot.lane.b32.xlu0 %v134, 112
  %v140 = vpop.permute.xlu0 %139
  %141 = vrot.lane.b32.xlu0 %v138, 112
  %v142 = vpop.permute.xlu0 %141
  %143 = vrot.lane.b32.xlu0 %v135, 112
  %v144 = vpop.permute.xlu0 %143
  %vm145 = vcmask 916480
  %v146 = vsel %vm145, %v140, %v142
  %v147 = vsel %vm145, %v142, %v144
  %150 = vst [vmem:[#allocation2 + $0x60] sm:$0xf] %v146
  %151 = vst [vmem:[#allocation2 + $0x68] sm:$0xf] %v147
  %v152 = vld [vmem:[%s0] sm:$0xff]
  %v153 = vld [vmem:[%s0 + $0x8] sm:$0xf]
  %v156 = vcombine.high %v152, %v152
  %157 = vrot.lane.b32.xlu0 %v152, 111
  %v158 = vpop.permute.xlu0 %157
  %159 = vrot.lane.b32.xlu0 %v156, 111
  %v160 = vpop.permute.xlu0 %159
  %161 = vrot.lane.b32.xlu0 %v153, 111
  %v162 = vpop.permute.xlu0 %161
  %vm163 = vcmask 908288
  %v164 = vsel %vm163, %v158, %v160
  %v165 = vsel %vm163, %v160, %v162
  %168 = vst [vmem:[#allocation2 + $0x80] sm:$0xf] %v164
  %169 = vst [vmem:[#allocation2 + $0x88] sm:$0xf] %v165
  %v170 = vld [vmem:[%s0] sm:$0xff]
  %v171 = vld [vmem:[%s0 + $0x8] sm:$0xf]
  %v174 = vcombine.high %v170, %v170
  %175 = vrot.lane.b32.xlu0 %v170, 110
  %v176 = vpop.permute.xlu0 %175
  %177 = vrot.lane.b32.xlu0 %v174, 110
  %v178 = vpop.permute.xlu0 %177
  %179 = vrot.lane.b32.xlu0 %v171, 110
  %v180 = vpop.permute.xlu0 %179
  %vm181 = vcmask 900096
  %v182 = vsel %vm181, %v176, %v178
  %v183 = vsel %vm181, %v178, %v180
  %186 = vst [vmem:[#allocation2 + $0xa0] sm:$0xf] %v182
  %187 = vst [vmem:[#allocation2 + $0xa8] sm:$0xf] %v183
  %v188 = vld [vmem:[%s0] sm:$0xff]
  %v189 = vld [vmem:[%s0 + $0x8] sm:$0xf]
  %v192 = vcombine.high %v188, %v188
  %193 = vrot.lane.b32.xlu0 %v188, 96
  %v194 = vpop.permute.xlu0 %193
  %195 = vrot.lane.b32.xlu0 %v192, 96
  %v196 = vpop.permute.xlu0 %195
  %197 = vrot.lane.b32.xlu0 %v189, 96
  %v198 = vpop.permute.xlu0 %197
  %vm199 = vcmask 785408
  %v200 = vsel %vm199, %v194, %v196
  %v201 = vsel %vm199, %v196, %v198
  %204 = vst [vmem:[#allocation2 + $0xc0] sm:$0xf] %v200
  %205 = vst [vmem:[#allocation2 + $0xc8] sm:$0xf] %v201
  %v206 = vld [vmem:[%s0] sm:$0xff]
  %v207 = vld [vmem:[%s0 + $0x8] sm:$0xf]
  %v210 = vcombine.high %v206, %v206
  %211 = vrot.lane.b32.xlu0 %v206, 95
  %v212 = vpop.permute.xlu0 %211
  %213 = vrot.lane.b32.xlu0 %v210, 95
  %v214 = vpop.permute.xlu0 %213
  %215 = vrot.lane.b32.xlu0 %v207, 95
  %v216 = vpop.permute.xlu0 %215
  %vm217 = vcmask 777216
  %v218 = vsel %vm217, %v212, %v214
  %v219 = vsel %vm217, %v214, %v216
  %222 = vst [vmem:[#allocation2 + $0xe0] sm:$0xf] %v218
  %223 = vst [vmem:[#allocation2 + $0xe8] sm:$0xf] %v219
  %v224 = vld [vmem:[%s0] sm:$0xff]
  %v225 = vld [vmem:[%s0 + $0x8] sm:$0xf]
  %v228 = vcombine.high %v224, %v224
  %229 = vrot.lane.b32.xlu0 %v224, 94
  %v230 = vpop.permute.xlu0 %229
  %231 = vrot.lane.b32.xlu0 %v228, 94
  %v232 = vpop.permute.xlu0 %231
  %233 = vrot.lane.b32.xlu0 %v225, 94
  %v234 = vpop.permute.xlu0 %233
  %vm235 = vcmask 769024
  %v236 = vsel %vm235, %v230, %v232
  %v237 = vsel %vm235, %v232, %v234
  %240 = vst [vmem:[#allocation2 + $0x100] sm:$0xf] %v236
  %241 = vst [vmem:[#allocation2 + $0x108] sm:$0xf] %v237
  %s242 = scalar_lea.vmem %s0, 12
  %v243 = vld [vmem:[%s242] sm:$0xff]
  %v245 = vcombine.high %v243, %v243
  %247 = vst [vmem:[#allocation2 + $0x10] sm:$0xf] %v243
  %248 = vst [vmem:[#allocation2 + $0x18] sm:$0xf] %v245
  %v249 = vld [vmem:[%s242] sm:$0xff]
  %v250 = vld [vmem:[%s242 + $0x8] sm:$0xf]
  %v253 = vcombine.high %v249, %v249
  %254 = vrot.lane.b32.xlu0 %v249, 127
  %v255 = vpop.permute.xlu0 %254
  %256 = vrot.lane.b32.xlu0 %v253, 127
  %v257 = vpop.permute.xlu0 %256
  %258 = vrot.lane.b32.xlu0 %v250, 127
  %v259 = vpop.permute.xlu0 %258
  %v260 = vsel %vm109, %v255, %v257
  %v261 = vsel %vm109, %v257, %v259
  %264 = vst [vmem:[#allocation2 + $0x30] sm:$0xf] %v260
  %265 = vst [vmem:[#allocation2 + $0x38] sm:$0xf] %v261
  %v266 = vld [vmem:[%s242] sm:$0xff]
  %v267 = vld [vmem:[%s242 + $0x8] sm:$0xf]
  %v270 = vcombine.high %v266, %v266
  %271 = vrot.lane.b32.xlu0 %v266, 126
  %v272 = vpop.permute.xlu0 %271
  %273 = vrot.lane.b32.xlu0 %v270, 126
  %v274 = vpop.permute.xlu0 %273
  %275 = vrot.lane.b32.xlu0 %v267, 126
  %v276 = vpop.permute.xlu0 %275
  %v277 = vsel %vm127, %v272, %v274
  %v278 = vsel %vm127, %v274, %v276
  %281 = vst [vmem:[#allocation2 + $0x50] sm:$0xf] %v277
  %282 = vst [vmem:[#allocation2 + $0x58] sm:$0xf] %v278
  %v283 = vld [vmem:[%s242] sm:$0xff]
  %v284 = vld [vmem:[%s242 + $0x8] sm:$0xf]
  %v287 = vcombine.high %v283, %v283
  %288 = vrot.lane.b32.xlu0 %v283, 112
  %v289 = vpop.permute.xlu0 %288
  %290 = vrot.lane.b32.xlu0 %v287, 112
  %v291 = vpop.permute.xlu0 %290
  %292 = vrot.lane.b32.xlu0 %v284, 112
  %v293 = vpop.permute.xlu0 %292
  %v294 = vsel %vm145, %v289, %v291
  %v295 = vsel %vm145, %v291, %v293
  %298 = vst [vmem:[#allocation2 + $0x70] sm:$0xf] %v294
  %299 = vst [vmem:[#allocation2 + $0x78] sm:$0xf] %v295
  %v300 = vld [vmem:[%s242] sm:$0xff]
  %v301 = vld [vmem:[%s242 + $0x8] sm:$0xf]
  %v304 = vcombine.high %v300, %v300
  %305 = vrot.lane.b32.xlu0 %v300, 111
  %v306 = vpop.permute.xlu0 %305
  %307 = vrot.lane.b32.xlu0 %v304, 111
  %v308 = vpop.permute.xlu0 %307
  %309 = vrot.lane.b32.xlu0 %v301, 111
  %v310 = vpop.permute.xlu0 %309
  %v311 = vsel %vm163, %v306, %v308
  %v312 = vsel %vm163, %v308, %v310
  %315 = vst [vmem:[#allocation2 + $0x90] sm:$0xf] %v311
  %316 = vst [vmem:[#allocation2 + $0x98] sm:$0xf] %v312
  %v317 = vld [vmem:[%s242] sm:$0xff]
  %v318 = vld [vmem:[%s242 + $0x8] sm:$0xf]
  %v321 = vcombine.high %v317, %v317
  %322 = vrot.lane.b32.xlu0 %v317, 110
  %v323 = vpop.permute.xlu0 %322
  %324 = vrot.lane.b32.xlu0 %v321, 110
  %v325 = vpop.permute.xlu0 %324
  %326 = vrot.lane.b32.xlu0 %v318, 110
  %v327 = vpop.permute.xlu0 %326
  %v328 = vsel %vm181, %v323, %v325
  %v329 = vsel %vm181, %v325, %v327
  %332 = vst [vmem:[#allocation2 + $0xb0] sm:$0xf] %v328
  %333 = vst [vmem:[#allocation2 + $0xb8] sm:$0xf] %v329
  %v334 = vld [vmem:[%s242] sm:$0xff]
  %v335 = vld [vmem:[%s242 + $0x8] sm:$0xf]
  %v338 = vcombine.high %v334, %v334
  %339 = vrot.lane.b32.xlu0 %v334, 96
  %v340 = vpop.permute.xlu0 %339
  %341 = vrot.lane.b32.xlu0 %v338, 96
  %v342 = vpop.permute.xlu0 %341
  %343 = vrot.lane.b32.xlu0 %v335, 96
  %v344 = vpop.permute.xlu0 %343
  %v345 = vsel %vm199, %v340, %v342
  %v346 = vsel %vm199, %v342, %v344
  %349 = vst [vmem:[#allocation2 + $0xd0] sm:$0xf] %v345
  %350 = vst [vmem:[#allocation2 + $0xd8] sm:$0xf] %v346
  %v351 = vld [vmem:[%s242] sm:$0xff]
  %v352 = vld [vmem:[%s242 + $0x8] sm:$0xf]
  %v355 = vcombine.high %v351, %v351
  %356 = vrot.lane.b32.xlu0 %v351, 95
  %v357 = vpop.permute.xlu0 %356
  %358 = vrot.lane.b32.xlu0 %v355, 95
  %v359 = vpop.permute.xlu0 %358
  %360 = vrot.lane.b32.xlu0 %v352, 95
  %v361 = vpop.permute.xlu0 %360
  %v362 = vsel %vm217, %v357, %v359
  %v363 = vsel %vm217, %v359, %v361
  %366 = vst [vmem:[#allocation2 + $0xf0] sm:$0xf] %v362
  %367 = vst [vmem:[#allocation2 + $0xf8] sm:$0xf] %v363
  %v368 = vld [vmem:[%s242] sm:$0xff]
  %v369 = vld [vmem:[%s242 + $0x8] sm:$0xf]
  %v372 = vcombine.high %v368, %v368
  %373 = vrot.lane.b32.xlu0 %v368, 94
  %v374 = vpop.permute.xlu0 %373
  %375 = vrot.lane.b32.xlu0 %v372, 94
  %v376 = vpop.permute.xlu0 %375
  %377 = vrot.lane.b32.xlu0 %v369, 94
  %v378 = vpop.permute.xlu0 %377
  %v379 = vsel %vm235, %v374, %v376
  %v380 = vsel %vm235, %v376, %v378
  %383 = vst [vmem:[#allocation2 + $0x110] sm:$0xf] %v379
  %384 = vst [vmem:[#allocation2 + $0x118] sm:$0xf] %v380
  %v385 = vld [vmem:[%s1] sm:$0xff]
  %v386 = vld [vmem:[#allocation2] sm:$0xff]
  %v387 = vld [vmem:[#allocation2 + $0x8] sm:$0xff]
  %v388 = vld [vmem:[#allocation2 + $0x10] sm:$0xff]
  %v389 = vld [vmem:[#allocation2 + $0x18] sm:$0xff]
  %v390 = vld [vmem:[#allocation2 + $0x20] sm:$0xff]
  %v391 = vld [vmem:[#allocation2 + $0x28] sm:$0xff]
  %v392 = vld [vmem:[#allocation2 + $0x30] sm:$0xff]
  %v393 = vld [vmem:[#allocation2 + $0x38] sm:$0xff]
  %v394 = vld [vmem:[#allocation2 + $0x40] sm:$0xff]
  %v395 = vld [vmem:[#allocation2 + $0x48] sm:$0xff]
  %v396 = vld [vmem:[#allocation2 + $0x50] sm:$0xff]
  %v397 = vld [vmem:[#allocation2 + $0x58] sm:$0xff]
  %v398 = vld [vmem:[#allocation2 + $0x60] sm:$0xff]
  %v399 = vld [vmem:[#allocation2 + $0x68] sm:$0xff]
  %v400 = vld [vmem:[#allocation2 + $0x70] sm:$0xff]
  %v401 = vld [vmem:[#allocation2 + $0x78] sm:$0xff]
  %v402 = vld [vmem:[#allocation2 + $0x80] sm:$0xff]
  %v403 = vld [vmem:[#allocation2 + $0x88] sm:$0xff]
  %v404 = vld [vmem:[#allocation2 + $0x90] sm:$0xff]
  %v405 = vld [vmem:[#allocation2 + $0x98] sm:$0xff]
  %v406 = vld [vmem:[#allocation2 + $0xa0] sm:$0xff]
  %v407 = vld [vmem:[#allocation2 + $0xa8] sm:$0xff]
  %v408 = vld [vmem:[#allocation2 + $0xb0] sm:$0xff]
  %v409 = vld [vmem:[#allocation2 + $0xb8] sm:$0xff]
  %v410 = vld [vmem:[#allocation2 + $0xc0] sm:$0xff]
  %v411 = vld [vmem:[#allocation2 + $0xc8] sm:$0xff]
  %v412 = vld [vmem:[#allocation2 + $0xd0] sm:$0xff]
  %v413 = vld [vmem:[#allocation2 + $0xd8] sm:$0xff]
  %v414 = vld [vmem:[#allocation2 + $0xe0] sm:$0xff]
  %v415 = vld [vmem:[#allocation2 + $0xe8] sm:$0xff]
  %v416 = vld [vmem:[#allocation2 + $0xf0] sm:$0xff]
  %v417 = vld [vmem:[#allocation2 + $0xf8] sm:$0xff]
  %v418 = vld [vmem:[#allocation2 + $0x100] sm:$0xff]
  %v419 = vld [vmem:[#allocation2 + $0x108] sm:$0xff]
  %v420 = vld [vmem:[#allocation2 + $0x110] sm:$0xff]
  %v421 = vld [vmem:[#allocation2 + $0x118] sm:$0xff]
  %v422 = vld [vmem:[#allocation2 + $0x120] sm:$0x1]
  %v423 = vld [vmem:[#allocation2 + $0x128] sm:$0x1]
  %v424 = vld [vmem:[#allocation2 + $0x130] sm:$0x1]
  %v425 = vld [vmem:[#allocation2 + $0x138] sm:$0x1]
  %vm426 = vcmask 596992
  %v428 = vsel %vm426, %v385, 0
  %vm430 = vcmask 1040384
  %v432 = vsel %vm430, %v422, 0
  %v435 = vsel %vm430, %v423, 0
  %v438 = vsel %vm430, %v424, 0
  %v441 = vsel %vm430, %v425, 0
  %443 = vmatprep.subr.mxu0 %v387
  %444 = vmatpush1.msra.mxu0 %v386
  %445 = vmatprep.subr.mxu0 %v391
  %446 = vmatpush1.msra.mxu0 %v390
  %447 = vmatprep.subr.mxu0 %v395
  %448 = vmatpush1.msra.mxu0 %v394
  %449 = vmatprep.subr.mxu0 %v399
  %450 = vmatpush1.msra.mxu0 %v398
  %451 = vmatprep.subr.mxu0 %v403
  %452 = vmatpush1.msra.mxu0 %v402
  %453 = vmatprep.subr.mxu0 %v407
  %454 = vmatpush1.msra.mxu0 %v406
  %455 = vmatprep.subr.mxu0 %v411
  %456 = vmatpush1.msra.mxu0 %v410
  %457 = vmatprep.subr.mxu0 %v415
  %458 = vmatpush1.msra.mxu0 %v414
  %459 = vmatprep.subr.mxu0 %v419
  %460 = vmatpush1.msra.mxu0 %v418
  %461 = vmatprep.subr.mxu0 %v435
  %462 = vmatpush1.msra.mxu0 %v432
  %463 = vmatprep.subr.mxu0 0.0
  %464 = vmatpush1.msra.mxu0 0.0
  %465 = vmatprep.subr.mxu0 0.0
  %466 = vmatpush1.msra.mxu0 0.0
  %467 = vmatprep.subr.mxu0 0.0
  %468 = vmatpush1.msra.mxu0 0.0
  %469 = vmatprep.subr.mxu0 0.0
  %470 = vmatpush1.msra.mxu0 0.0
  %471 = vmatprep.subr.mxu0 0.0
  %472 = vmatpush1.msra.mxu0 0.0
  %473 = vmatprep.subr.mxu0 0.0
  %474 = vmatpush1.msra.mxu0 0.0
  %475 = vmatprep.subr.mxu0 0.0
  %476 = vmatpush1.msra.mxu0 0.0
  %477 = vmatprep.subr.mxu0 0.0
  %478 = vmatpush1.msra.mxu0 0.0
  %479 = vmatprep.subr.mxu0 0.0
  %480 = vmatpush1.msra.mxu0 0.0
  %481 = vmatprep.subr.mxu0 0.0
  %482 = vmatpush1.msra.mxu0 0.0
  %483 = vmatprep.subr.mxu0 0.0
  %484 = vmatpush1.msra.mxu0 0.0
  %485 = vmatprep.subr.mxu0 0.0
  %486 = vmatpush1.msra.mxu0 0.0
  %487 = vmatprep.subr.mxu0 0.0
  %488 = vmatpush1.msra.mxu0 0.0
  %489 = vmatprep.subr.mxu0 0.0
  %490 = vmatpush1.msra.mxu0 0.0
  %491 = vmatprep.subr.mxu0 0.0
  %492 = vmatpush1.msra.mxu0 0.0
  %493 = vmatprep.subr.mxu0 0.0
  %494 = vmatpush1.msra.mxu0 0.0
  %495 = vmatprep.subr.mxu0 0.0
  %496 = vmatpush1.msra.mxu0 0.0
  %497 = vmatprep.subr.mxu0 0.0
  %498 = vmatpush1.msra.mxu0 0.0
  %499 = vmatprep.subr.mxu0 0.0
  %500 = vmatpush1.msra.mxu0 0.0
  %501 = vmatprep.subr.mxu0 0.0
  %502 = vmatpush1.msra.mxu0 0.0
  %503 = vmatprep.subr.mxu0 0.0
  %504 = vmatpush1.msra.mxu0 0.0
  %505 = vmatprep.subr.mxu0 0.0
  %506 = vmatpush1.msra.mxu0 0.0
  %507 = vmatprep.mubr.f32.mxu0 0.0
  %508 = vmatmul.mubr.f32.gmra.mrb[0].mxu0 %v428
  %v509 = vpop.f32.mrb[0].mxu0
  %v510 = vadd.f32 0.0, %v509
  %v511 = vpop.f32.mrb[0].mxu0
  %v512 = vadd.f32 0.0, %v511
  %513 = vdwg.mxu0
  %514 = vmatprep.subr.mxu0 %v389
  %515 = vmatpush1.msra.mxu0 %v388
  %516 = vmatprep.subr.mxu0 %v393
  %517 = vmatpush1.msra.mxu0 %v392
  %518 = vmatprep.subr.mxu0 %v397
  %519 = vmatpush1.msra.mxu0 %v396
  %520 = vmatprep.subr.mxu0 %v401
  %521 = vmatpush1.msra.mxu0 %v400
  %522 = vmatprep.subr.mxu0 %v405
  %523 = vmatpush1.msra.mxu0 %v404
  %524 = vmatprep.subr.mxu0 %v409
  %525 = vmatpush1.msra.mxu0 %v408
  %526 = vmatprep.subr.mxu0 %v413
  %527 = vmatpush1.msra.mxu0 %v412
  %528 = vmatprep.subr.mxu0 %v417
  %529 = vmatpush1.msra.mxu0 %v416
  %530 = vmatprep.subr.mxu0 %v421
  %531 = vmatpush1.msra.mxu0 %v420
  %532 = vmatprep.subr.mxu0 %v441
  %533 = vmatpush1.msra.mxu0 %v438
  %534 = vmatprep.subr.mxu0 0.0
  %535 = vmatpush1.msra.mxu0 0.0
  %536 = vmatprep.subr.mxu0 0.0
  %537 = vmatpush1.msra.mxu0 0.0
  %538 = vmatprep.subr.mxu0 0.0
  %539 = vmatpush1.msra.mxu0 0.0
  %540 = vmatprep.subr.mxu0 0.0
  %541 = vmatpush1.msra.mxu0 0.0
  %542 = vmatprep.subr.mxu0 0.0
  %543 = vmatpush1.msra.mxu0 0.0
  %544 = vmatprep.subr.mxu0 0.0
  %545 = vmatpush1.msra.mxu0 0.0
  %546 = vmatprep.subr.mxu0 0.0
  %547 = vmatpush1.msra.mxu0 0.0
  %548 = vmatprep.subr.mxu0 0.0
  %549 = vmatpush1.msra.mxu0 0.0
  %550 = vmatprep.subr.mxu0 0.0
  %551 = vmatpush1.msra.mxu0 0.0
  %552 = vmatprep.subr.mxu0 0.0
  %553 = vmatpush1.msra.mxu0 0.0
  %554 = vmatprep.subr.mxu0 0.0
  %555 = vmatpush1.msra.mxu0 0.0
  %556 = vmatprep.subr.mxu0 0.0
  %557 = vmatpush1.msra.mxu0 0.0
  %558 = vmatprep.subr.mxu0 0.0
  %559 = vmatpush1.msra.mxu0 0.0
  %560 = vmatprep.subr.mxu0 0.0
  %561 = vmatpush1.msra.mxu0 0.0
  %562 = vmatprep.subr.mxu0 0.0
  %563 = vmatpush1.msra.mxu0 0.0
  %564 = vmatprep.subr.mxu0 0.0
  %565 = vmatpush1.msra.mxu0 0.0
  %566 = vmatprep.subr.mxu0 0.0
  %567 = vmatpush1.msra.mxu0 0.0
  %568 = vmatprep.subr.mxu0 0.0
  %569 = vmatpush1.msra.mxu0 0.0
  %570 = vmatprep.subr.mxu0 0.0
  %571 = vmatpush1.msra.mxu0 0.0
  %572 = vmatprep.subr.mxu0 0.0
  %573 = vmatpush1.msra.mxu0 0.0
  %574 = vmatprep.subr.mxu0 0.0
  %575 = vmatpush1.msra.mxu0 0.0
  %576 = vmatprep.subr.mxu0 0.0
  %577 = vmatpush1.msra.mxu0 0.0
  %578 = vmatprep.mubr.f32.mxu0 0.0
  %579 = vmatmul.mubr.f32.gmra.mrb[0].mxu0 %v428
  %v580 = vpop.f32.mrb[0].mxu0
  %v581 = vadd.f32 0.0, %v580
  %v582 = vpop.f32.mrb[0].mxu0
  %v583 = vadd.f32 0.0, %v582
  %584 = vdwg.mxu0
  %585 = vst [vmem:[%s2] sm:$0xff] %v510
  %586 = vst [vmem:[%s2 + $0x8] sm:$0xff] %v512
  %s587 = scalar_lea.vmem %s2, 16
  %588 = vst [vmem:[%s587] sm:$0xff] %v581
  %589 = vst [vmem:[%s587 + $0x8] sm:$0xff] %v583
  // Predicated region
  $region10: #{conv2d_pallas.1} parent=0 // pred_check
    _
  $region11: #{conv2d_pallas.1} parent=0 // pred_check_branch
    %591 = sbr.rel (0) target = $region13
  $region12: #{conv2d_pallas.1} parent=0 // pred_region
    _
  $region13: #{conv2d_pallas.1} parent=0 // pred_fallthru
    _
  // Predicated region
  $region14: #{conv2d_pallas.1} parent=0 // pred_check
    _
  $region15: #{conv2d_pallas.1} parent=0 // pred_check_branch
    %593 = sbr.rel (0) target = $region17
  $region16: #{conv2d_pallas.1} parent=0 // pred_region
    _
  $region17: #{conv2d_pallas.1} parent=0 // pred_fallthru
    _

</llo_original>
